<compile_context>
chip_gen: v7x
topology: tpu7x:2x2x1
jax: 0.10.0
libtpu: 0.0.40
codegen_flags: <defaults>
</compile_context>

<pallas_src>
import functools

import jax
import jax.numpy as jnp
from jax.experimental import pallas as pl
from jax.experimental.pallas import tpu as pltpu

K = 3          # torch.topk(x, 3)
PAD = 128      # lane-dense output width (results live in lanes 0..K-1)
BIG = 2 ** 30  # "invalid index" sentinel, > any real column index


def _lowest(dtype):
    if jnp.issubdtype(dtype, jnp.floating):
        return jnp.array(-jnp.inf, dtype=dtype)
    return jnp.array(jnp.iinfo(dtype).min, dtype=dtype)


def _topk3_kernel(x_ref, vals_ref, idx_ref, accv_ref, acci_ref, *, n_cols):
    j = pl.program_id(1)
    nj = pl.num_programs(1)

    tile = x_ref[...]                                   # (TB, TN), native dtype
    TB, TN = tile.shape
    low = _lowest(tile.dtype)

    lane = jax.lax.broadcasted_iota(jnp.int32, (TB, TN), 1)

    # Ragged last tile: mask columns >= n_cols (static no-op when TN | n_cols).
    if n_cols % TN != 0:
        valid = (lane + j * TN) < n_cols
        work = jnp.where(valid, tile, low)
        avail = jnp.where(valid, lane, BIG)
    else:
        work = tile
        avail = lane

    # ---- tile-local top-3: 3 unrolled passes over (TB, TN) only ----------
    # Per pass: 1 max reduce, 1 cmp, 1 select, 1 min reduce, 1 cmp, 2 selects.
    loc_v = []
    loc_p = []
    for _ in range(K):
        v = jnp.max(work, axis=-1, keepdims=True)                    # (TB, 1)
        hit = work == v
        p = jnp.min(jnp.where(hit, avail, BIG), axis=-1, keepdims=True)
        sel = lane == p                       # exactly one lane (or none if p==BIG)
        loc_v.append(v)
        loc_p.append(p)
        work = jnp.where(sel, low, work)      # remove winner's value
        avail = jnp.where(sel, BIG, avail)    # and its index (handles -inf rows)

    # ---- merge with the carried top-3 in a tiny (TB, PAD) slab ------------
    mlane = jax.lax.broadcasted_iota(jnp.int32, (TB, PAD), 1)

    @pl.when(j == 0)
    def _():
        accv_ref[...] = jnp.full((TB, PAD), low, dtype=accv_ref.dtype)
        acci_ref[...] = jnp.full((TB, PAD), BIG, dtype=jnp.int32)

    cand_v = accv_ref[...]                    # carried top-3 in lanes 0..2
    cand_i = acci_ref[...]
    for k in range(K):
        # Global index on (TB,1) only; guard the "no valid lane" sentinel.
        gidx = jnp.where(loc_p[k] >= BIG, BIG, loc_p[k] + j * TN)
        sel = mlane == (K + k)                # locals go into lanes 3..5
        cand_v = jnp.where(sel, loc_v[k].astype(cand_v.dtype), cand_v)
        cand_i = jnp.where(sel, gidx, cand_i)

    # 3-pass selection over the slab (6 meaningful lanes); min-index tie-break.
    m_v = []
    m_i = []
    wv, wi = cand_v, cand_i
    for _ in range(K):
        v = jnp.max(wv, axis=-1, keepdims=True)
        hit = wv == v
        i = jnp.min(jnp.where(hit, wi, BIG), axis=-1, keepdims=True)
        sel = wi == i                         # real indices are unique
        m_v.append(v)
        m_i.append(i)
        wv = jnp.where(sel, low, wv)
        wi = jnp.where(sel, BIG, wi)

    new_v = jnp.full((TB, PAD), low, dtype=cand_v.dtype)
    new_i = jnp.full((TB, PAD), BIG, dtype=jnp.int32)
    for k in range(K):
        new_v = jnp.where(mlane == k, m_v[k].astype(new_v.dtype), new_v)
        new_i = jnp.where(mlane == k, m_i[k], new_i)

    accv_ref[...] = new_v
    acci_ref[...] = new_i

    # Lane-dense outputs written once, at the final N step only.
    @pl.when(j == nj - 1)
    def _():
        vals_ref[...] = new_v.astype(vals_ref.dtype)
        idx_ref[...] = new_i


def _pick_tb(b):
    """Row tile: multiple of 8 (or full B if B<=8); >=2 row blocks when B>=16."""
    if b <= 8:
        return b
    tb = min(256, (b // 8) * 8)
    if b >= 16:
        half = max(8, (b // 2) // 8 * 8)
        tb = min(tb, half)          # keep grid[0] >= 2 for v7x megacore
    return tb


def _pick_tn(n):
    """Lane tile: multiple of 128 capped at 4096 (or full N if N<=128)."""
    if n <= 128:
        return n                    # full extent (legal block dim)
    return (min(n, 4096) // 128) * 128


def beam_search_topk3(x, *, tb=None, tn=None):
    """Equivalent of BeamSearch.forward: returns (values, indexes) = topk(x, 3).

    Indices are int32 (torch returns int64; identical semantics for N < 2^31).
    """
    B, N = x.shape
    if N < K:
        raise ValueError("topk(x, 3) needs at least 3 columns")

    if tb is None:
        tb = _pick_tb(B)
    if tn is None:
        tn = _pick_tn(N)
    grid = (pl.cdiv(B, tb), pl.cdiv(N, tn))

    itemsize = jnp.dtype(x.dtype).itemsize
    # VMEM budget: double-buffered input tile + scratch slabs + output blocks.
    vmem_needed = (2 * tb * tn * itemsize
                   + tb * PAD * (itemsize + 4)
                   + 2 * tb * PAD * (itemsize + 4))
    vmem_limit = int(max(16 << 20, min(vmem_needed + (4 << 20), 48 << 20)))

    cost = pl.CostEstimate(
        flops=18 * B * N,                              # compares/selects/reduces
        transcendentals=0,
        bytes_accessed=B * N * itemsize + 2 * B * PAD * (itemsize + 4))

    kernel = functools.partial(_topk3_kernel, n_cols=N)

    vals_pad, idx_pad = pl.pallas_call(
        kernel,
        out_shape=(jax.ShapeDtypeStruct((B, PAD), x.dtype),
                   jax.ShapeDtypeStruct((B, PAD), jnp.int32)),
        grid=grid,
        in_specs=[pl.BlockSpec((tb, tn), lambda i, j: (i, j))],
        out_specs=(pl.BlockSpec((tb, PAD), lambda i, j: (i, 0)),
                   pl.BlockSpec((tb, PAD), lambda i, j: (i, 0))),
        scratch_shapes=[pltpu.VMEM((tb, PAD), x.dtype),
                        pltpu.VMEM((tb, PAD), jnp.int32)],
        compiler_params=pltpu.CompilerParams(
            dimension_semantics=("parallel", "arbitrary"),
            vmem_limit_bytes=vmem_limit),
        cost_estimate=cost,
    )(x)
    return vals_pad[:, :K], idx_pad[:, :K]


if __name__ == "__main__":
    key = jax.random.PRNGKey(0)
    k1, k2, k3 = jax.random.split(key, 3)

    # Small shape consistent with the forward: batch=8 rows of 32 scores.
    x = jax.random.normal(k1, (8, 32), dtype=jnp.float32)
    values, indexes = beam_search_topk3(x)
    values = jax.block_until_ready(values)
    indexes = jax.block_until_ready(indexes)

    ref_vals, ref_idx = jax.lax.top_k(x, K)
    assert jnp.allclose(values, ref_vals), "values mismatch"
    assert jnp.array_equal(indexes, ref_idx.astype(jnp.int32)), "indexes mismatch"

    # Multi-tile path along N with a ragged last tile (exercises masking).
    x2 = jax.random.normal(k2, (16, 4500), dtype=jnp.float32)
    v2, i2 = beam_search_topk3(x2, tn=2048)
    v2 = jax.block_until_ready(v2)
    i2 = jax.block_until_ready(i2)
    rv2, ri2 = jax.lax.top_k(x2, K)
    assert jnp.allclose(v2, rv2), "values mismatch (tiled)"
    assert jnp.array_equal(i2, ri2.astype(jnp.int32)), "indexes mismatch (tiled)"

    # Ties + -inf edge case: duplicate values and fully -inf rows.
    x3 = jnp.concatenate(
        [jnp.tile(jnp.arange(8, dtype=jnp.float32), (4, 16)),
         jnp.full((4, 128), -jnp.inf, dtype=jnp.float32)], axis=0)
    v3, i3 = beam_search_topk3(x3)
    v3 = jax.block_until_ready(v3)
    i3 = jax.block_until_ready(i3)
    rv3, ri3 = jax.lax.top_k(x3, K)
    assert jnp.allclose(v3, rv3), "values mismatch (ties/-inf)"
    assert jnp.array_equal(i3, ri3.astype(jnp.int32)), "indexes mismatch (ties/-inf)"

    # Matches the prints in the reference forward.
    print("values: ", values)
    print("indexes: ", indexes)
    print("KERNEL_OK")
</pallas_src>

<mosaic_0001>
module attributes {stable_mosaic.version = 11 : i64} {
  func.func @_topk3_kernel(%arg0: i32, %arg1: i32, %arg2: memref<8x32xf32, #tpu.memory_space<vmem>>, %arg3: memref<8x128xf32, #tpu.memory_space<vmem>>, %arg4: memref<8x128xi32, #tpu.memory_space<vmem>>, %arg5: memref<8x128xf32, #tpu.memory_space<vmem>>, %arg6: memref<8x128xi32, #tpu.memory_space<vmem>>) attributes {dimension_semantics = [#tpu.dimension_semantics<parallel>, #tpu.dimension_semantics<arbitrary>], iteration_bounds = array<i64: 1, 1>, scalar_prefetch = 0 : i64, scratch_operands = 2 : i64, tpu.core_type = #tpu.core_type<tc>, window_params = [{transform_indices = @transform_0, window_bounds = array<i64: 8, 32>}, {transform_indices = @transform_1, window_bounds = array<i64: 8, 128>}, {transform_indices = @transform_2, window_bounds = array<i64: 8, 128>}]} {
    %c0 = arith.constant 0 : index
    %c0_0 = arith.constant 0 : index
    %0 = vector.load %arg2[%c0, %c0_0] : memref<8x32xf32, #tpu.memory_space<vmem>>, vector<8x32xf32>
    %1 = tpu.iota {dimensions = array<i32: 1>} : vector<8x32xi32>
    %cst = arith.constant dense<0xFF800000> : vector<8xf32>
    %2 = vector.multi_reduction <maximumf>, %0, %cst [1] : vector<8x32xf32> to vector<8xf32>
    %3 = vector.shape_cast %2 : vector<8xf32> to vector<8x1xf32>
    %4 = vector.broadcast %3 : vector<8x1xf32> to vector<8x32xf32>
    %5 = arith.cmpf oeq, %0, %4 : vector<8x32xf32>
    %c1073741824_i32 = arith.constant 1073741824 : i32
    %6 = vector.broadcast %c1073741824_i32 : i32 to vector<8x32xi32>
    %7 = arith.select %5, %1, %6 : vector<8x32xi1>, vector<8x32xi32>
    %cst_1 = arith.constant dense<2147483647> : vector<8xi32>
    %8 = vector.multi_reduction <minsi>, %7, %cst_1 [1] : vector<8x32xi32> to vector<8xi32>
    %9 = vector.shape_cast %8 : vector<8xi32> to vector<8x1xi32>
    %10 = vector.broadcast %9 : vector<8x1xi32> to vector<8x32xi32>
    %11 = arith.cmpi eq, %1, %10 : vector<8x32xi32>
    %cst_2 = arith.constant 0xFF800000 : f32
    %12 = vector.broadcast %cst_2 : f32 to vector<8x32xf32>
    %13 = arith.select %11, %12, %0 : vector<8x32xi1>, vector<8x32xf32>
    %c1073741824_i32_3 = arith.constant 1073741824 : i32
    %14 = vector.broadcast %c1073741824_i32_3 : i32 to vector<8x32xi32>
    %15 = arith.select %11, %14, %1 : vector<8x32xi1>, vector<8x32xi32>
    %cst_4 = arith.constant dense<0xFF800000> : vector<8xf32>
    %16 = vector.multi_reduction <maximumf>, %13, %cst_4 [1] : vector<8x32xf32> to vector<8xf32>
    %17 = vector.shape_cast %16 : vector<8xf32> to vector<8x1xf32>
    %18 = vector.broadcast %17 : vector<8x1xf32> to vector<8x32xf32>
    %19 = arith.cmpf oeq, %13, %18 : vector<8x32xf32>
    %c1073741824_i32_5 = arith.constant 1073741824 : i32
    %20 = vector.broadcast %c1073741824_i32_5 : i32 to vector<8x32xi32>
    %21 = arith.select %19, %15, %20 : vector<8x32xi1>, vector<8x32xi32>
    %cst_6 = arith.constant dense<2147483647> : vector<8xi32>
    %22 = vector.multi_reduction <minsi>, %21, %cst_6 [1] : vector<8x32xi32> to vector<8xi32>
    %23 = vector.shape_cast %22 : vector<8xi32> to vector<8x1xi32>
    %24 = vector.broadcast %23 : vector<8x1xi32> to vector<8x32xi32>
    %25 = arith.cmpi eq, %1, %24 : vector<8x32xi32>
    %cst_7 = arith.constant 0xFF800000 : f32
    %26 = vector.broadcast %cst_7 : f32 to vector<8x32xf32>
    %27 = arith.select %25, %26, %13 : vector<8x32xi1>, vector<8x32xf32>
    %c1073741824_i32_8 = arith.constant 1073741824 : i32
    %28 = vector.broadcast %c1073741824_i32_8 : i32 to vector<8x32xi32>
    %29 = arith.select %25, %28, %15 : vector<8x32xi1>, vector<8x32xi32>
    %cst_9 = arith.constant dense<0xFF800000> : vector<8xf32>
    %30 = vector.multi_reduction <maximumf>, %27, %cst_9 [1] : vector<8x32xf32> to vector<8xf32>
    %31 = vector.shape_cast %30 : vector<8xf32> to vector<8x1xf32>
    %32 = vector.broadcast %31 : vector<8x1xf32> to vector<8x32xf32>
    %33 = arith.cmpf oeq, %27, %32 : vector<8x32xf32>
    %c1073741824_i32_10 = arith.constant 1073741824 : i32
    %34 = vector.broadcast %c1073741824_i32_10 : i32 to vector<8x32xi32>
    %35 = arith.select %33, %29, %34 : vector<8x32xi1>, vector<8x32xi32>
    %cst_11 = arith.constant dense<2147483647> : vector<8xi32>
    %36 = vector.multi_reduction <minsi>, %35, %cst_11 [1] : vector<8x32xi32> to vector<8xi32>
    %37 = vector.shape_cast %36 : vector<8xi32> to vector<8x1xi32>
    %38 = tpu.iota {dimensions = array<i32: 1>} : vector<8x128xi32>
    %c0_i32 = arith.constant 0 : i32
    %39 = arith.cmpi eq, %arg1, %c0_i32 : i32
    %40 = arith.extui %39 : i1 to i32
    %cst_12 = arith.constant 0xFF800000 : f32
    %c0_i32_13 = arith.constant 0 : i32
    %41 = arith.cmpi ne, %40, %c0_i32_13 : i32
    scf.if %41 {
      %162 = vector.broadcast %cst_12 : f32 to vector<8x128xf32>
      %c0_51 = arith.constant 0 : index
      %c0_52 = arith.constant 0 : index
      %163 = vector.load %arg5[%c0_51, %c0_52] : memref<8x128xf32, #tpu.memory_space<vmem>>, vector<8x128xf32>
      tpu.vector_store %arg5[%c0_51, %c0_52], %162 {strides = array<i32>} : memref<8x128xf32, #tpu.memory_space<vmem>>, vector<8x128xf32>,
      %c1073741824_i32_53 = arith.constant 1073741824 : i32
      %164 = vector.broadcast %c1073741824_i32_53 : i32 to vector<8x128xi32>
      %c0_54 = arith.constant 0 : index
      %c0_55 = arith.constant 0 : index
      %165 = vector.load %arg6[%c0_54, %c0_55] : memref<8x128xi32, #tpu.memory_space<vmem>>, vector<8x128xi32>
      tpu.vector_store %arg6[%c0_54, %c0_55], %164 {strides = array<i32>} : memref<8x128xi32, #tpu.memory_space<vmem>>, vector<8x128xi32>,
    } else {
    }
    %c0_14 = arith.constant 0 : index
    %c0_15 = arith.constant 0 : index
    %42 = vector.load %arg5[%c0_14, %c0_15] : memref<8x128xf32, #tpu.memory_space<vmem>>, vector<8x128xf32>
    %c0_16 = arith.constant 0 : index
    %c0_17 = arith.constant 0 : index
    %43 = vector.load %arg6[%c0_16, %c0_17] : memref<8x128xi32, #tpu.memory_space<vmem>>, vector<8x128xi32>
    %c1073741824_i32_18 = arith.constant 1073741824 : i32
    %44 = vector.broadcast %c1073741824_i32_18 : i32 to vector<8x1xi32>
    %45 = arith.cmpi sge, %9, %44 : vector<8x1xi32>
    %c32_i32 = arith.constant 32 : i32
    %46 = arith.muli %arg1, %c32_i32 : i32
    %47 = vector.broadcast %46 : i32 to vector<8x1xi32>
    %48 = arith.addi %9, %47 : vector<8x1xi32>
    %c1073741824_i32_19 = arith.constant 1073741824 : i32
    %49 = vector.broadcast %c1073741824_i32_19 : i32 to vector<8x1xi32>
    %50 = arith.select %45, %49, %48 : vector<8x1xi1>, vector<8x1xi32>
    %c3_i32 = arith.constant 3 : i32
    %51 = vector.broadcast %c3_i32 : i32 to vector<8x128xi32>
    %52 = arith.cmpi eq, %38, %51 : vector<8x128xi32>
    %53 = vector.shape_cast %3 : vector<8x1xf32> to vector<8x1xf32>
    %54 = vector.broadcast %53 : vector<8x1xf32> to vector<8x128xf32>
    %55 = arith.select %52, %54, %42 : vector<8x128xi1>, vector<8x128xf32>
    %56 = vector.shape_cast %50 : vector<8x1xi32> to vector<8x1xi32>
    %57 = vector.broadcast %56 : vector<8x1xi32> to vector<8x128xi32>
    %58 = arith.select %52, %57, %43 : vector<8x128xi1>, vector<8x128xi32>
    %c1073741824_i32_20 = arith.constant 1073741824 : i32
    %59 = vector.broadcast %c1073741824_i32_20 : i32 to vector<8x1xi32>
    %60 = arith.cmpi sge, %23, %59 : vector<8x1xi32>
    %c32_i32_21 = arith.constant 32 : i32
    %61 = arith.muli %arg1, %c32_i32_21 : i32
    %62 = vector.broadcast %61 : i32 to vector<8x1xi32>
    %63 = arith.addi %23, %62 : vector<8x1xi32>
    %c1073741824_i32_22 = arith.constant 1073741824 : i32
    %64 = vector.broadcast %c1073741824_i32_22 : i32 to vector<8x1xi32>
    %65 = arith.select %60, %64, %63 : vector<8x1xi1>, vector<8x1xi32>
    %c4_i32 = arith.constant 4 : i32
    %66 = vector.broadcast %c4_i32 : i32 to vector<8x128xi32>
    %67 = arith.cmpi eq, %38, %66 : vector<8x128xi32>
    %68 = vector.shape_cast %17 : vector<8x1xf32> to vector<8x1xf32>
    %69 = vector.broadcast %68 : vector<8x1xf32> to vector<8x128xf32>
    %70 = arith.select %67, %69, %55 : vector<8x128xi1>, vector<8x128xf32>
    %71 = vector.shape_cast %65 : vector<8x1xi32> to vector<8x1xi32>
    %72 = vector.broadcast %71 : vector<8x1xi32> to vector<8x128xi32>
    %73 = arith.select %67, %72, %58 : vector<8x128xi1>, vector<8x128xi32>
    %c1073741824_i32_23 = arith.constant 1073741824 : i32
    %74 = vector.broadcast %c1073741824_i32_23 : i32 to vector<8x1xi32>
    %75 = arith.cmpi sge, %37, %74 : vector<8x1xi32>
    %c32_i32_24 = arith.constant 32 : i32
    %76 = arith.muli %arg1, %c32_i32_24 : i32
    %77 = vector.broadcast %76 : i32 to vector<8x1xi32>
    %78 = arith.addi %37, %77 : vector<8x1xi32>
    %c1073741824_i32_25 = arith.constant 1073741824 : i32
    %79 = vector.broadcast %c1073741824_i32_25 : i32 to vector<8x1xi32>
    %80 = arith.select %75, %79, %78 : vector<8x1xi1>, vector<8x1xi32>
    %c5_i32 = arith.constant 5 : i32
    %81 = vector.broadcast %c5_i32 : i32 to vector<8x128xi32>
    %82 = arith.cmpi eq, %38, %81 : vector<8x128xi32>
    %83 = vector.shape_cast %31 : vector<8x1xf32> to vector<8x1xf32>
    %84 = vector.broadcast %83 : vector<8x1xf32> to vector<8x128xf32>
    %85 = arith.select %82, %84, %70 : vector<8x128xi1>, vector<8x128xf32>
    %86 = vector.shape_cast %80 : vector<8x1xi32> to vector<8x1xi32>
    %87 = vector.broadcast %86 : vector<8x1xi32> to vector<8x128xi32>
    %88 = arith.select %82, %87, %73 : vector<8x128xi1>, vector<8x128xi32>
    %cst_26 = arith.constant dense<0xFF800000> : vector<8xf32>
    %89 = vector.multi_reduction <maximumf>, %85, %cst_26 [1] : vector<8x128xf32> to vector<8xf32>
    %90 = vector.shape_cast %89 : vector<8xf32> to vector<8x1xf32>
    %91 = vector.broadcast %90 : vector<8x1xf32> to vector<8x128xf32>
    %92 = arith.cmpf oeq, %85, %91 : vector<8x128xf32>
    %c1073741824_i32_27 = arith.constant 1073741824 : i32
    %93 = vector.broadcast %c1073741824_i32_27 : i32 to vector<8x128xi32>
    %94 = arith.select %92, %88, %93 : vector<8x128xi1>, vector<8x128xi32>
    %cst_28 = arith.constant dense<2147483647> : vector<8xi32>
    %95 = vector.multi_reduction <minsi>, %94, %cst_28 [1] : vector<8x128xi32> to vector<8xi32>
    %96 = vector.shape_cast %95 : vector<8xi32> to vector<8x1xi32>
    %97 = vector.broadcast %96 : vector<8x1xi32> to vector<8x128xi32>
    %98 = arith.cmpi eq, %88, %97 : vector<8x128xi32>
    %cst_29 = arith.constant 0xFF800000 : f32
    %99 = vector.broadcast %cst_29 : f32 to vector<8x128xf32>
    %100 = arith.select %98, %99, %85 : vector<8x128xi1>, vector<8x128xf32>
    %c1073741824_i32_30 = arith.constant 1073741824 : i32
    %101 = vector.broadcast %c1073741824_i32_30 : i32 to vector<8x128xi32>
    %102 = arith.select %98, %101, %88 : vector<8x128xi1>, vector<8x128xi32>
    %cst_31 = arith.constant dense<0xFF800000> : vector<8xf32>
    %103 = vector.multi_reduction <maximumf>, %100, %cst_31 [1] : vector<8x128xf32> to vector<8xf32>
    %104 = vector.shape_cast %103 : vector<8xf32> to vector<8x1xf32>
    %105 = vector.broadcast %104 : vector<8x1xf32> to vector<8x128xf32>
    %106 = arith.cmpf oeq, %100, %105 : vector<8x128xf32>
    %c1073741824_i32_32 = arith.constant 1073741824 : i32
    %107 = vector.broadcast %c1073741824_i32_32 : i32 to vector<8x128xi32>
    %108 = arith.select %106, %102, %107 : vector<8x128xi1>, vector<8x128xi32>
    %cst_33 = arith.constant dense<2147483647> : vector<8xi32>
    %109 = vector.multi_reduction <minsi>, %108, %cst_33 [1] : vector<8x128xi32> to vector<8xi32>
    %110 = vector.shape_cast %109 : vector<8xi32> to vector<8x1xi32>
    %111 = vector.broadcast %110 : vector<8x1xi32> to vector<8x128xi32>
    %112 = arith.cmpi eq, %102, %111 : vector<8x128xi32>
    %cst_34 = arith.constant 0xFF800000 : f32
    %113 = vector.broadcast %cst_34 : f32 to vector<8x128xf32>
    %114 = arith.select %112, %113, %100 : vector<8x128xi1>, vector<8x128xf32>
    %c1073741824_i32_35 = arith.constant 1073741824 : i32
    %115 = vector.broadcast %c1073741824_i32_35 : i32 to vector<8x128xi32>
    %116 = arith.select %112, %115, %102 : vector<8x128xi1>, vector<8x128xi32>
    %cst_36 = arith.constant dense<0xFF800000> : vector<8xf32>
    %117 = vector.multi_reduction <maximumf>, %114, %cst_36 [1] : vector<8x128xf32> to vector<8xf32>
    %118 = vector.shape_cast %117 : vector<8xf32> to vector<8x1xf32>
    %119 = vector.broadcast %118 : vector<8x1xf32> to vector<8x128xf32>
    %120 = arith.cmpf oeq, %114, %119 : vector<8x128xf32>
    %c1073741824_i32_37 = arith.constant 1073741824 : i32
    %121 = vector.broadcast %c1073741824_i32_37 : i32 to vector<8x128xi32>
    %122 = arith.select %120, %116, %121 : vector<8x128xi1>, vector<8x128xi32>
    %cst_38 = arith.constant dense<2147483647> : vector<8xi32>
    %123 = vector.multi_reduction <minsi>, %122, %cst_38 [1] : vector<8x128xi32> to vector<8xi32>
    %124 = vector.shape_cast %123 : vector<8xi32> to vector<8x1xi32>
    %cst_39 = arith.constant 0xFF800000 : f32
    %125 = vector.broadcast %cst_39 : f32 to vector<8x128xf32>
    %c1073741824_i32_40 = arith.constant 1073741824 : i32
    %126 = vector.broadcast %c1073741824_i32_40 : i32 to vector<8x128xi32>
    %c0_i32_41 = arith.constant 0 : i32
    %127 = vector.broadcast %c0_i32_41 : i32 to vector<8x128xi32>
    %128 = arith.cmpi eq, %38, %127 : vector<8x128xi32>
    %129 = vector.shape_cast %90 : vector<8x1xf32> to vector<8x1xf32>
    %130 = vector.broadcast %129 : vector<8x1xf32> to vector<8x128xf32>
    %131 = arith.select %128, %130, %125 : vector<8x128xi1>, vector<8x128xf32>
    %c0_i32_42 = arith.constant 0 : i32
    %132 = vector.broadcast %c0_i32_42 : i32 to vector<8x128xi32>
    %133 = arith.cmpi eq, %38, %132 : vector<8x128xi32>
    %134 = vector.shape_cast %96 : vector<8x1xi32> to vector<8x1xi32>
    %135 = vector.broadcast %134 : vector<8x1xi32> to vector<8x128xi32>
    %136 = arith.select %133, %135, %126 : vector<8x128xi1>, vector<8x128xi32>
    %c1_i32 = arith.constant 1 : i32
    %137 = vector.broadcast %c1_i32 : i32 to vector<8x128xi32>
    %138 = arith.cmpi eq, %38, %137 : vector<8x128xi32>
    %139 = vector.shape_cast %104 : vector<8x1xf32> to vector<8x1xf32>
    %140 = vector.broadcast %139 : vector<8x1xf32> to vector<8x128xf32>
    %141 = arith.select %138, %140, %131 : vector<8x128xi1>, vector<8x128xf32>
    %c1_i32_43 = arith.constant 1 : i32
    %142 = vector.broadcast %c1_i32_43 : i32 to vector<8x128xi32>
    %143 = arith.cmpi eq, %38, %142 : vector<8x128xi32>
    %144 = vector.shape_cast %110 : vector<8x1xi32> to vector<8x1xi32>
    %145 = vector.broadcast %144 : vector<8x1xi32> to vector<8x128xi32>
    %146 = arith.select %143, %145, %136 : vector<8x128xi1>, vector<8x128xi32>
    %c2_i32 = arith.constant 2 : i32
    %147 = vector.broadcast %c2_i32 : i32 to vector<8x128xi32>
    %148 = arith.cmpi eq, %38, %147 : vector<8x128xi32>
    %149 = vector.shape_cast %118 : vector<8x1xf32> to vector<8x1xf32>
    %150 = vector.broadcast %149 : vector<8x1xf32> to vector<8x128xf32>
    %151 = arith.select %148, %150, %141 : vector<8x128xi1>, vector<8x128xf32>
    %c2_i32_44 = arith.constant 2 : i32
    %152 = vector.broadcast %c2_i32_44 : i32 to vector<8x128xi32>
    %153 = arith.cmpi eq, %38, %152 : vector<8x128xi32>
    %154 = vector.shape_cast %124 : vector<8x1xi32> to vector<8x1xi32>
    %155 = vector.broadcast %154 : vector<8x1xi32> to vector<8x128xi32>
    %156 = arith.select %153, %155, %146 : vector<8x128xi1>, vector<8x128xi32>
    %c0_45 = arith.constant 0 : index
    %c0_46 = arith.constant 0 : index
    %157 = vector.load %arg5[%c0_45, %c0_46] : memref<8x128xf32, #tpu.memory_space<vmem>>, vector<8x128xf32>
    tpu.vector_store %arg5[%c0_45, %c0_46], %151 {strides = array<i32>} : memref<8x128xf32, #tpu.memory_space<vmem>>, vector<8x128xf32>,
    %c0_47 = arith.constant 0 : index
    %c0_48 = arith.constant 0 : index
    %158 = vector.load %arg6[%c0_47, %c0_48] : memref<8x128xi32, #tpu.memory_space<vmem>>, vector<8x128xi32>
    tpu.vector_store %arg6[%c0_47, %c0_48], %156 {strides = array<i32>} : memref<8x128xi32, #tpu.memory_space<vmem>>, vector<8x128xi32>,
    %c0_i32_49 = arith.constant 0 : i32
    %159 = arith.cmpi eq, %arg1, %c0_i32_49 : i32
    %160 = arith.extui %159 : i1 to i32
    %c0_i32_50 = arith.constant 0 : i32
    %161 = arith.cmpi ne, %160, %c0_i32_50 : i32
    scf.if %161 {
      %c0_51 = arith.constant 0 : index
      %c0_52 = arith.constant 0 : index
      %162 = vector.load %arg3[%c0_51, %c0_52] : memref<8x128xf32, #tpu.memory_space<vmem>>, vector<8x128xf32>
      tpu.vector_store %arg3[%c0_51, %c0_52], %151 {strides = array<i32>} : memref<8x128xf32, #tpu.memory_space<vmem>>, vector<8x128xf32>,
      %c0_53 = arith.constant 0 : index
      %c0_54 = arith.constant 0 : index
      %163 = vector.load %arg4[%c0_53, %c0_54] : memref<8x128xi32, #tpu.memory_space<vmem>>, vector<8x128xi32>
      tpu.vector_store %arg4[%c0_53, %c0_54], %156 {strides = array<i32>} : memref<8x128xi32, #tpu.memory_space<vmem>>, vector<8x128xi32>,
    } else {
    }
    return
  }
  func.func @transform_0(%arg0: i32, %arg1: i32) -> (i32, i32) {
    %c0_i32 = arith.constant 0 : i32
    return %arg0, %arg1 : i32, i32
  }
  func.func @transform_1(%arg0: i32, %arg1: i32) -> (i32, i32) {
    %c0_i32 = arith.constant 0 : i32
    %c0_i32_0 = arith.constant 0 : i32
    return %arg0, %c0_i32 : i32, i32
  }
  func.func @transform_2(%arg0: i32, %arg1: i32) -> (i32, i32) {
    %c0_i32 = arith.constant 0 : i32
    %c0_i32_0 = arith.constant 0 : i32
    return %arg0, %c0_i32 : i32, i32
  }
}

</mosaic_0001>

<llo_original>
// kernel: tpu_custom_call.1
$region0: #{tpu_custom_call.1}
  #allocation0 [shape = 'u32[]', space=smem, size = 0x4, offset = 0x4, fixed_abs, tag = 'smem constant byte address 0x4 - core index']
  #allocation1 [shape = 'u32[144,128]{1,0:T(1,128)}', space=vmem, size = 0x12000, scoped, tag = 'internal scratch']
  #allocation2 [shape = 'f32[8,128]{1,0:T(8,128)}', space=vmem, size = 0x1000, scoped, tag = 'scratch operand']
  #allocation3 [shape = 's32[8,128]{1,0:T(8,128)}', space=vmem, size = 0x1000, scoped, tag = 'scratch operand']
  %s0 = inlined_call_operand.hbm [shape: f32[8,32], index: 0, kind: input, shape index: {}]
  %s1 = inlined_call_operand.hbm [shape: f32[8,128], index: 1, kind: output, shape index: {0}]
  %s2 = inlined_call_operand.hbm [shape: s32[8,128], index: 2, kind: output, shape index: {1}]
  %3 = xla_tuple %s1, %s2
  %s4 = sld [smem:[#allocation0]]
  $region34: #{tpu_custom_call.1} parent=0
    _
  %s6 = ssub.s32 1, %s4
  %s7 = scalar_select 0, %s6, %s4
  $region1: #{tpu_custom_call.1} parent=0
    #allocation4 [shape = 'u8[4096]{0}', space=vmem, size = 0x1000, scoped, tag = 'input window, operand 0, single buffered']
    #allocation5 [shape = 's32[1]{0}', space=sflag, size = 0x4, scoped, tag = 'scoped memory for tpu_custom_call.1']
    #allocation6 [shape = 's32[1]{0}', space=sflag, size = 0x4, scoped, tag = 'scoped memory for tpu_custom_call.1']
    #allocation7 [shape = 'u8[4096]{0}', space=vmem, size = 0x1000, scoped, tag = 'output window, operand 0, single buffered']
    #allocation8 [shape = 'u8[4096]{0}', space=vmem, size = 0x1000, scoped, tag = 'output window, operand 1, single buffered']
    #allocation9 [shape = 's32[1]{0}', space=sflag, size = 0x4, scoped, tag = 'scoped memory for tpu_custom_call.1']
    %8 = vsyncpa [#allocation5], 0
    %9 = vsyncpa [#allocation6], 0
    %10 = vsyncpa [#allocation9], 0
    // Predicated region
    $region2: #{tpu_custom_call.1} parent=1 // pred_check
      _
    $region3: #{tpu_custom_call.1} parent=1 // pred_check_branch
      %12 = sbr.rel (0) target = $region5
    $region4: #{tpu_custom_call.1} parent=1 // pred_region
      %s14 = ssub.s32 128, 128
      %15 = vsyncadd [#allocation5], %s14
      %s17 = sshll.u32 [#allocation4], 4
      %s18 = int_to_ptr.vmem [resolvable:$true] %s17
      %20 = dma.hbm_to_vmem [thread:$0]  %s0, 128, %s18, [#allocation5]
    $region5: #{tpu_custom_call.1} parent=1 // pred_fallthru
      _
    // Predicated region
    $region6: #{tpu_custom_call.1} parent=1 // pred_check
      _
    $region7: #{tpu_custom_call.1} parent=1 // pred_check_branch
      %22 = sbr.rel (0) target = $region9
    $region8: #{tpu_custom_call.1} parent=1 // pred_region
      %23 = dma.done [#allocation5], 128
    $region9: #{tpu_custom_call.1} parent=1 // pred_fallthru
      _
    %v24 = vld [vmem:[#allocation4] sm:$0xff]
    %v25 = vlaneseq
    %v26 = vand.u32 %v25, 127
    %vm27 = vcmask 261120
    %v28 = vsel %vm27, %v24, -inf
    %29 = vmax.xlane.f32.xlu0 %v28
    %v30 = vpop.xlane.xlu0 %29
    %vm31 = vcmp.eq.f32.partialorder %v24, %v30
    %v32 = vsel %vm31, %v26, 1073741824
    %v33 = vsel %vm27, %v32, 2147483647
    %v34 = vand.u32 %v33, 65535
    %v35 = vshra.s32 %v33, 16
    %v36 = vcvt.s32.f32 %v34
    %v37 = vcvt.s32.f32 %v35
    %38 = vmin.xlane.f32.xlu0 %v37
    %v39 = vpop.xlane.xlu0 %38
    %vm40 = vcmp.eq.f32.partialorder %v37, %v39
    %v41 = vsel %vm40, %v36, inf
    %42 = vmin.xlane.f32.xlu0 %v41
    %v43 = vpop.xlane.xlu0 %42
    %v44 = vcvt.f32.s32 %v43
    %v45 = vcvt.f32.s32 %v39
    %v46 = vshll.u32 %v45, 16
    %v47 = vadd.s32 %v46, %v44
    %vm48 = vcmp.eq.s32.totalorder %v26, %v47
    %v49 = vsel %vm48, -inf, %v24
    %v50 = vsel %vm48, 1073741824, %v26
    %v51 = vsel %vm27, %v49, -inf
    %52 = vmax.xlane.f32.xlu0 %v51
    %v53 = vpop.xlane.xlu0 %52
    %vm54 = vcmp.eq.f32.partialorder %v49, %v53
    %v55 = vsel %vm54, %v50, 1073741824
    %v56 = vsel %vm27, %v55, 2147483647
    %v57 = vand.u32 %v56, 65535
    %v58 = vshra.s32 %v56, 16
    %v59 = vcvt.s32.f32 %v57
    %v60 = vcvt.s32.f32 %v58
    %61 = vmin.xlane.f32.xlu0 %v60
    %v62 = vpop.xlane.xlu0 %61
    %vm63 = vcmp.eq.f32.partialorder %v60, %v62
    %v64 = vsel %vm63, %v59, inf
    %65 = vmin.xlane.f32.xlu0 %v64
    %v66 = vpop.xlane.xlu0 %65
    %v67 = vcvt.f32.s32 %v66
    %v68 = vcvt.f32.s32 %v62
    %v69 = vshll.u32 %v68, 16
    %v70 = vadd.s32 %v69, %v67
    %vm71 = vcmp.eq.s32.totalorder %v26, %v70
    %v72 = vsel %vm71, -inf, %v49
    %v73 = vsel %vm71, 1073741824, %v50
    %v74 = vsel %vm27, %v72, -inf
    %75 = vmax.xlane.f32.xlu0 %v74
    %v76 = vpop.xlane.xlu0 %75
    %vm77 = vcmp.eq.f32.partialorder %v72, %v76
    %v78 = vsel %vm77, %v73, 1073741824
    %v79 = vsel %vm27, %v78, 2147483647
    %v80 = vand.u32 %v79, 65535
    %v81 = vshra.s32 %v79, 16
    %v82 = vcvt.s32.f32 %v80
    %v83 = vcvt.s32.f32 %v81
    %84 = vmin.xlane.f32.xlu0 %v83
    %v85 = vpop.xlane.xlu0 %84
    %vm86 = vcmp.eq.f32.partialorder %v83, %v85
    %v87 = vsel %vm86, %v82, inf
    %88 = vmin.xlane.f32.xlu0 %v87
    %v89 = vpop.xlane.xlu0 %88
    %v90 = vcvt.f32.s32 %v89
    %v91 = vcvt.f32.s32 %v85
    %v92 = vshll.u32 %v91, 16
    %v93 = vadd.s32 %v92, %v90
    %p94 = scmp.eq.s32.totalorder 0, 0
    // Predicated region
    $region10: #{tpu_custom_call.1} parent=1 // pred_check
      %p95 = pneg %p94
    $region11: #{tpu_custom_call.1} parent=1 // pred_check_branch
      %97 = sbr.rel (%p95) target = $region13
    $region12: #{tpu_custom_call.1} parent=1 // pred_region
      %98 = vst [vmem:[#allocation2] sm:$0xff] -inf
      %99 = vst [vmem:[#allocation3] sm:$0xff] 1073741824
    $region13: #{tpu_custom_call.1} parent=1 // pred_fallthru
      _
    %v100 = vld [vmem:[#allocation2] sm:$0xff]
    %v101 = vld [vmem:[#allocation3] sm:$0xff]
    %vm102 = vcmp.ge.s32.totalorder %v47, 1073741824
    %s103 = smul.u32 0, 32
    %v104 = vstv %s103
    %v105 = vadd.s32 %v47, %v104
    %v106 = vsel %vm102, 1073741824, %v105
    %vm107 = vcmp.eq.s32.totalorder %v26, 3
    %v108 = vsel %vm107, %v30, %v100
    %v109 = vsel %vm107, %v106, %v101
    %vm110 = vcmp.ge.s32.totalorder %v70, 1073741824
    %v111 = vadd.s32 %v70, %v104
    %v112 = vsel %vm110, 1073741824, %v111
    %vm113 = vcmp.eq.s32.totalorder %v26, 4
    %v114 = vsel %vm113, %v53, %v108
    %v115 = vsel %vm113, %v112, %v109
    %vm116 = vcmp.ge.s32.totalorder %v93, 1073741824
    %v117 = vadd.s32 %v93, %v104
    %v118 = vsel %vm116, 1073741824, %v117
    %vm119 = vcmp.eq.s32.totalorder %v26, 5
    %v120 = vsel %vm119, %v76, %v114
    %v121 = vsel %vm119, %v118, %v115
    %122 = vmax.xlane.f32.xlu0 %v120
    %v123 = vpop.xlane.xlu0 %122
    %vm124 = vcmp.eq.f32.partialorder %v120, %v123
    %v125 = vsel %vm124, %v121, 1073741824
    %v126 = vand.u32 %v125, 65535
    %v127 = vshra.s32 %v125, 16
    %v128 = vcvt.s32.f32 %v126
    %v129 = vcvt.s32.f32 %v127
    %130 = vmin.xlane.f32.xlu0 %v129
    %v131 = vpop.xlane.xlu0 %130
    %vm132 = vcmp.eq.f32.partialorder %v129, %v131
    %v133 = vsel %vm132, %v128, inf
    %134 = vmin.xlane.f32.xlu0 %v133
    %v135 = vpop.xlane.xlu0 %134
    %v136 = vcvt.f32.s32 %v135
    %v137 = vcvt.f32.s32 %v131
    %v138 = vshll.u32 %v137, 16
    %v139 = vadd.s32 %v138, %v136
    %vm140 = vcmp.eq.s32.totalorder %v121, %v139
    %v141 = vsel %vm140, -inf, %v120
    %v142 = vsel %vm140, 1073741824, %v121
    %143 = vmax.xlane.f32.xlu0 %v141
    %v144 = vpop.xlane.xlu0 %143
    %vm145 = vcmp.eq.f32.partialorder %v141, %v144
    %v146 = vsel %vm145, %v142, 1073741824
    %v147 = vand.u32 %v146, 65535
    %v148 = vshra.s32 %v146, 16
    %v149 = vcvt.s32.f32 %v147
    %v150 = vcvt.s32.f32 %v148
    %151 = vmin.xlane.f32.xlu0 %v150
    %v152 = vpop.xlane.xlu0 %151
    %vm153 = vcmp.eq.f32.partialorder %v150, %v152
    %v154 = vsel %vm153, %v149, inf
    %155 = vmin.xlane.f32.xlu0 %v154
    %v156 = vpop.xlane.xlu0 %155
    %v157 = vcvt.f32.s32 %v156
    %v158 = vcvt.f32.s32 %v152
    %v159 = vshll.u32 %v158, 16
    %v160 = vadd.s32 %v159, %v157
    %vm161 = vcmp.eq.s32.totalorder %v142, %v160
    %v162 = vsel %vm161, -inf, %v141
    %v163 = vsel %vm161, 1073741824, %v142
    %164 = vmax.xlane.f32.xlu0 %v162
    %v165 = vpop.xlane.xlu0 %164
    %vm166 = vcmp.eq.f32.partialorder %v162, %v165
    %v167 = vsel %vm166, %v163, 1073741824
    %v168 = vand.u32 %v167, 65535
    %v169 = vshra.s32 %v167, 16
    %v170 = vcvt.s32.f32 %v168
    %v171 = vcvt.s32.f32 %v169
    %172 = vmin.xlane.f32.xlu0 %v171
    %v173 = vpop.xlane.xlu0 %172
    %vm174 = vcmp.eq.f32.partialorder %v171, %v173
    %v175 = vsel %vm174, %v170, inf
    %176 = vmin.xlane.f32.xlu0 %v175
    %v177 = vpop.xlane.xlu0 %176
    %v178 = vcvt.f32.s32 %v177
    %v179 = vcvt.f32.s32 %v173
    %v180 = vshll.u32 %v179, 16
    %v181 = vadd.s32 %v180, %v178
    %vm182 = vcmp.eq.s32.totalorder %v26, 0
    %v183 = vsel %vm182, %v123, -inf
    %v184 = vsel %vm182, %v139, 1073741824
    %vm185 = vcmp.eq.s32.totalorder %v26, 1
    %v186 = vsel %vm185, %v144, %v183
    %v187 = vsel %vm185, %v160, %v184
    %vm188 = vcmp.eq.s32.totalorder %v26, 2
    %v189 = vsel %vm188, %v165, %v186
    %v190 = vsel %vm188, %v181, %v187
    %191 = vst [vmem:[#allocation2] sm:$0xff] %v189
    %192 = vst [vmem:[#allocation3] sm:$0xff] %v190
    // Predicated region
    $region14: #{tpu_custom_call.1} parent=1 // pred_check
      %p193 = pneg %p94
    $region15: #{tpu_custom_call.1} parent=1 // pred_check_branch
      %195 = sbr.rel (%p193) target = $region17
    $region16: #{tpu_custom_call.1} parent=1 // pred_region
      %196 = vst [vmem:[#allocation7] sm:$0xff] %v189
      %197 = vst [vmem:[#allocation8] sm:$0xff] %v190
    $region17: #{tpu_custom_call.1} parent=1 // pred_fallthru
      _
    // Predicated region
    $region18: #{tpu_custom_call.1} parent=1 // pred_check
      _
    $region19: #{tpu_custom_call.1} parent=1 // pred_check_branch
      %199 = sbr.rel (0) target = $region21
    $region20: #{tpu_custom_call.1} parent=1 // pred_region
      %s201 = ssub.s32 128, 128
      %202 = vsyncadd [#allocation6], %s201
      %s204 = sshll.u32 [#allocation7], 4
      %s205 = int_to_ptr.vmem [resolvable:$true] %s204
      %207 = dma.vmem_to_hbm [thread:$0]  %s205, 128, %s1, [#allocation6]
    $region21: #{tpu_custom_call.1} parent=1 // pred_fallthru
      _
    // Predicated region
    $region22: #{tpu_custom_call.1} parent=1 // pred_check
      _
    $region23: #{tpu_custom_call.1} parent=1 // pred_check_branch
      %209 = sbr.rel (0) target = $region25
    $region24: #{tpu_custom_call.1} parent=1 // pred_region
      %s211 = ssub.s32 128, 128
      %212 = vsyncadd [#allocation9], %s211
      %s214 = sshll.u32 [#allocation8], 4
      %s215 = int_to_ptr.vmem [resolvable:$true] %s214
      %217 = dma.vmem_to_hbm [thread:$0]  %s215, 128, %s2, [#allocation9]
    $region25: #{tpu_custom_call.1} parent=1 // pred_fallthru
      _
    // Predicated region
    $region26: #{tpu_custom_call.1} parent=1 // pred_check
      _
    $region27: #{tpu_custom_call.1} parent=1 // pred_check_branch
      %219 = sbr.rel (0) target = $region29
    $region28: #{tpu_custom_call.1} parent=1 // pred_region
      %220 = dma.done [#allocation6], 128
    $region29: #{tpu_custom_call.1} parent=1 // pred_fallthru
      _
    // Predicated region
    $region30: #{tpu_custom_call.1} parent=1 // pred_check
      _
    $region31: #{tpu_custom_call.1} parent=1 // pred_check_branch
      %222 = sbr.rel (0) target = $region33
    $region32: #{tpu_custom_call.1} parent=1 // pred_region
      %223 = dma.done [#allocation9], 128
    $region33: #{tpu_custom_call.1} parent=1 // pred_fallthru
      _
    %224 = vsyncpa [#allocation5], 1
    %225 = vsyncpa [#allocation6], 1
    %226 = vsyncpa [#allocation9], 1

</llo_original>
